<compile_context>
chip_gen: v7x
topology: tpu7x:2x2x1
jax: 0.10.0
libtpu: 0.0.40
codegen_flags: <defaults>
</compile_context>

<pallas_src>
import functools

import jax
import jax.numpy as jnp
from jax.experimental import pallas as pl
from jax.experimental.pallas import tpu as pltpu


# ----------------------------------------------------------------------------
# Kernels
# ----------------------------------------------------------------------------
def _hydra_kernel_fused(x_ref, w1c_ref, b1c_ref, w2bd_ref, b2c_ref, o_ref):
    """Small-D path: both layers fused across heads.

    (TB, D) @ (D, H*D) -> bias+ReLU -> bf16 -> @ block-diag (H*D, H*O) -> bias.
    One lane-dense (TB, H*O) output slab; heads split in the wrapper.
    """
    x = x_ref[...]                                               # (TB, D) bf16
    h = jnp.dot(x, w1c_ref[...], preferred_element_type=jnp.float32)
    h = jnp.maximum(h + b1c_ref[...], 0.0)                       # bias + ReLU (f32)
    h = h.astype(w2bd_ref.dtype)                                 # bf16 for MXU
    y = jnp.dot(h, w2bd_ref[...], preferred_element_type=jnp.float32)
    o_ref[...] = (y + b2c_ref[...]).astype(o_ref.dtype)


def _hydra_kernel_perhead(x_ref, w1c_ref, b1c_ref, w2_ref, b2_ref, o_ref, *,
                          nb_heads, d):
    """Aligned-D path (D % 128 == 0): fused layer 1, per-head layer 2."""
    x = x_ref[...]                                               # (TB, D) bf16
    h_all = jnp.dot(x, w1c_ref[...], preferred_element_type=jnp.float32)
    h_all = jnp.maximum(h_all + b1c_ref[...], 0.0).astype(w2_ref.dtype)
    for h in range(nb_heads):                                    # static unroll
        hh = h_all[:, h * d:(h + 1) * d]                         # 128-aligned slice
        y = jnp.dot(hh, w2_ref[h], preferred_element_type=jnp.float32)
        o_ref[h] = (y + b2_ref[h]).astype(o_ref.dtype)


# ----------------------------------------------------------------------------
# Host-side (one-time) parameter packing — keep this OFF the per-call path.
# ----------------------------------------------------------------------------
def pack_hydra_params(w1, b1, w2, b2, *, weight_dtype=jnp.bfloat16):
    """Pack HydraProject parameters once at init time.

    w1: (H, D, D)  stored pre-transposed so y = x @ w1[h] + b1[h]
    b1: (H, 1, D)
    w2: (H, D, O)  pre-transposed
    b2: (H, 1, O)
    """
    H, D, _ = w1.shape
    O = w2.shape[-1]
    fuse_layer2 = (D % 128 != 0)      # small / unaligned D -> block-diagonal layer 2

    # Layer-1 weights concatenated along the output (lane) dim:
    # w1_cat[:, h*D:(h+1)*D] == w1[h].
    w1_cat = jnp.transpose(w1, (1, 0, 2)).reshape(D, H * D).astype(weight_dtype)
    b1_cat = b1.reshape(1, H * D).astype(jnp.float32)   # added to the f32 accumulator

    if fuse_layer2:
        w2_bd = jnp.zeros((H * D, H * O), dtype=weight_dtype)
        for h in range(H):
            w2_bd = w2_bd.at[h * D:(h + 1) * D, h * O:(h + 1) * O].set(
                w2[h].astype(weight_dtype))
        w2_p = w2_bd                                   # (H*D, H*O) block-diagonal
        b2_p = b2.reshape(1, H * O).astype(jnp.float32)
    else:
        w2_p = w2.astype(weight_dtype)                 # (H, D, O)
        b2_p = b2.astype(jnp.float32)                  # (H, 1, O)

    return dict(H=H, D=D, O=O, fuse_layer2=fuse_layer2,
                w1_cat=w1_cat, b1_cat=b1_cat, w2=w2_p, b2=b2_p,
                weight_dtype=weight_dtype)


# ----------------------------------------------------------------------------
# Wrapper
# ----------------------------------------------------------------------------
def _round_up(x, m):
    return (x + m - 1) // m * m


def _choose_batch_tiling(B, block_b, *, min_split=256):
    """Pick the batch tile: single full tile for small B, otherwise >= 2
    sublane-aligned tiles so v7x's two TensorCores both get "parallel" work."""
    if B <= min_split:
        return B, 1, B                                  # block == full extent
    tb = max(8, min(block_b, _round_up(pl.cdiv(B, 2), 8)))
    grid_b = pl.cdiv(B, tb)
    return tb, grid_b, grid_b * tb


def _vmem_limit_bytes(resident, x_tile, out_tile, scratch):
    # Weights are Buffered(1) (one copy); x/out tiles are double-buffered.
    est = resident + 2 * x_tile + 2 * out_tile + scratch
    est = int(est * 1.2) + (8 << 20)                    # compiler-internal headroom
    return max(32 << 20, min(est, 100 << 20))


def hydra_project(feats, params, *, block_b=256, out_dtype=None):
    """HydraProject forward (apply_bn=False): feats (B, D) -> (H, B, O)."""
    B, D = feats.shape
    H, O = params["H"], params["O"]
    assert D == params["D"], (D, params["D"])
    out_dtype = feats.dtype if out_dtype is None else out_dtype
    wdt = params["weight_dtype"]
    witm = jnp.dtype(wdt).itemsize
    oitm = jnp.dtype(out_dtype).itemsize

    x = feats.astype(wdt)
    tb, grid_b, b_pad = _choose_batch_tiling(B, block_b)
    if b_pad != B:
        # TODO(synk): replace with an in-kernel ragged-last-tile masked store to
        # avoid this extra HBM pass over activations at very large B.
        x = jnp.pad(x, ((0, b_pad - B), (0, 0)))

    resident_mode = pl.Buffered(1)   # B-invariant weights: single VMEM buffer
    compiler = lambda vmem: pltpu.CompilerParams(
        dimension_semantics=("parallel",), vmem_limit_bytes=vmem)

    if params["fuse_layer2"]:
        w2, b2 = params["w2"], params["b2"]            # (H*D, H*O), (1, H*O)
        resident = (params["w1_cat"].size + w2.size) * witm + \
                   (params["b1_cat"].size + b2.size) * 4
        scratch = tb * H * D * (4 + witm) + tb * H * O * 4
        vmem = _vmem_limit_bytes(resident, tb * D * witm, tb * H * O * oitm, scratch)

        out = pl.pallas_call(
            _hydra_kernel_fused,
            out_shape=jax.ShapeDtypeStruct((b_pad, H * O), out_dtype),
            grid_spec=pltpu.PrefetchScalarGridSpec(
                num_scalar_prefetch=0,
                grid=(grid_b,),
                in_specs=[
                    pl.BlockSpec((tb, D), lambda i: (i, 0)),
                    pl.BlockSpec((D, H * D), lambda i: (0, 0),
                                 pipeline_mode=resident_mode),
                    pl.BlockSpec((1, H * D), lambda i: (0, 0),
                                 pipeline_mode=resident_mode),
                    pl.BlockSpec((H * D, H * O), lambda i: (0, 0),
                                 pipeline_mode=resident_mode),
                    pl.BlockSpec((1, H * O), lambda i: (0, 0),
                                 pipeline_mode=resident_mode),
                ],
                out_specs=pl.BlockSpec((tb, H * O), lambda i: (i, 0)),
            ),
            compiler_params=compiler(vmem),
        )(x, params["w1_cat"], params["b1_cat"], w2, b2)
        out = out[:B] if b_pad != B else out
        # Lane-dense slab -> (H, B, O): layout plumbing in the wrapper.
        return jnp.transpose(out.reshape(B, H, O), (1, 0, 2))

    # ----- aligned-D path (D % 128 == 0): per-head layer-2 matmuls -----------
    # TODO(synk): for production D/O (e.g. 2048) add a K-dim "arbitrary" grid
    # axis over D with an f32 VMEM accumulator so W1_cat/W2 are streamed
    # instead of fully resident (required to stay under v7x's 64 MiB VMEM).
    w2, b2 = params["w2"], params["b2"]                # (H, D, O), (H, 1, O)
    resident = (params["w1_cat"].size + w2.size) * witm + \
               (params["b1_cat"].size + b2.size) * 4
    scratch = tb * H * D * (4 + witm) + tb * O * 4
    vmem = _vmem_limit_bytes(resident, tb * D * witm, H * tb * O * oitm, scratch)

    kernel = functools.partial(_hydra_kernel_perhead, nb_heads=H, d=D)
    out = pl.pallas_call(
        kernel,
        out_shape=jax.ShapeDtypeStruct((H, b_pad, O), out_dtype),
        grid_spec=pltpu.PrefetchScalarGridSpec(
            num_scalar_prefetch=0,
            grid=(grid_b,),
            in_specs=[
                pl.BlockSpec((tb, D), lambda i: (i, 0)),
                pl.BlockSpec((D, H * D), lambda i: (0, 0),
                             pipeline_mode=resident_mode),
                pl.BlockSpec((1, H * D), lambda i: (0, 0),
                             pipeline_mode=resident_mode),
                pl.BlockSpec((H, D, O), lambda i: (0, 0, 0),
                             pipeline_mode=resident_mode),
                pl.BlockSpec((H, 1, O), lambda i: (0, 0, 0),
                             pipeline_mode=resident_mode),
            ],
            out_specs=pl.BlockSpec((H, tb, O), lambda i: (0, i, 0)),
        ),
        compiler_params=compiler(vmem),
    )(x, params["w1_cat"], params["b1_cat"], w2, b2)
    return out[:, :B, :] if b_pad != B else out


# ----------------------------------------------------------------------------
# Pure-JAX reference (matches the kernel numerics: bf16 weights/acts, f32 acc)
# ----------------------------------------------------------------------------
def _reference(feats, w1, b1, w2, b2, weight_dtype=jnp.bfloat16):
    x = feats.astype(weight_dtype)
    h = jnp.einsum("bd,hde->hbe", x, w1.astype(weight_dtype),
                   preferred_element_type=jnp.float32) + b1
    h = jnp.maximum(h, 0.0).astype(weight_dtype)
    y = jnp.einsum("hbd,hdo->hbo", h, w2.astype(weight_dtype),
                   preferred_element_type=jnp.float32) + b2
    return y.astype(feats.dtype)


if __name__ == "__main__":
    nb_heads, B, input_dim, out_dim = 3, 8, 32, 128

    key = jax.random.PRNGKey(0)
    k_feats, k_w1, k_b1, k_w2, k_b2 = jax.random.split(key, 5)

    feats = jax.random.normal(k_feats, (B, input_dim), dtype=jnp.float32)
    s1 = 1.0 / jnp.sqrt(jnp.float32(input_dim))
    w1 = jax.random.uniform(k_w1, (nb_heads, input_dim, input_dim),
                            minval=-s1, maxval=s1, dtype=jnp.float32)
    b1 = jax.random.uniform(k_b1, (nb_heads, 1, input_dim),
                            minval=-s1, maxval=s1, dtype=jnp.float32)
    w2 = jax.random.uniform(k_w2, (nb_heads, input_dim, out_dim),
                            minval=-s1, maxval=s1, dtype=jnp.float32)
    b2 = jax.random.uniform(k_b2, (nb_heads, 1, out_dim),
                            minval=-s1, maxval=s1, dtype=jnp.float32)

    params = pack_hydra_params(w1, b1, w2, b2)          # packed ONCE, reused
    out = jax.block_until_ready(hydra_project(feats, params))
    ref = _reference(feats, w1, b1, w2, b2)
    assert out.shape == (nb_heads, B, out_dim), out.shape
    assert jnp.allclose(out, ref, atol=2e-2, rtol=2e-2), \
        float(jnp.max(jnp.abs(out - ref)))

    # Also exercise the aligned-D (per-head layer-2) path: D a multiple of 128.
    D2, B2 = 128, 16
    kf, kw1, kb1, kw2, kb2 = jax.random.split(jax.random.PRNGKey(1), 5)
    feats2 = jax.random.normal(kf, (B2, D2), dtype=jnp.float32)
    s2 = 1.0 / jnp.sqrt(jnp.float32(D2))
    w1b = jax.random.uniform(kw1, (nb_heads, D2, D2), minval=-s2, maxval=s2,
                             dtype=jnp.float32)
    b1b = jax.random.uniform(kb1, (nb_heads, 1, D2), minval=-s2, maxval=s2,
                             dtype=jnp.float32)
    w2b = jax.random.uniform(kw2, (nb_heads, D2, out_dim), minval=-s2, maxval=s2,
                             dtype=jnp.float32)
    b2b = jax.random.uniform(kb2, (nb_heads, 1, out_dim), minval=-s2, maxval=s2,
                             dtype=jnp.float32)
    params2 = pack_hydra_params(w1b, b1b, w2b, b2b)
    out2 = jax.block_until_ready(hydra_project(feats2, params2))
    ref2 = _reference(feats2, w1b, b1b, w2b, b2b)
    assert out2.shape == (nb_heads, B2, out_dim), out2.shape
    assert jnp.allclose(out2, ref2, atol=2e-2, rtol=2e-2), \
        float(jnp.max(jnp.abs(out2 - ref2)))

    print("KERNEL_OK")
</pallas_src>

<mosaic_0001>
module attributes {stable_mosaic.version = 11 : i64} {
  func.func @_hydra_kernel_fused(%arg0: i32, %arg1: memref<8x32xbf16, #tpu.memory_space<vmem>>, %arg2: memref<32x96xbf16, #tpu.memory_space<vmem>>, %arg3: memref<1x96xf32, #tpu.memory_space<vmem>>, %arg4: memref<96x384xbf16, #tpu.memory_space<vmem>>, %arg5: memref<1x384xf32, #tpu.memory_space<vmem>>, %arg6: memref<8x384xf32, #tpu.memory_space<vmem>>) attributes {dimension_semantics = [#tpu.dimension_semantics<parallel>], iteration_bounds = array<i64: 1>, scalar_prefetch = 0 : i64, scratch_operands = 0 : i64, tpu.core_type = #tpu.core_type<tc>, window_params = [{transform_indices = @transform_0, window_bounds = array<i64: 8, 32>}, {pipeline_mode = #tpu.pipeline_mode<synchronous>, transform_indices = @transform_1, window_bounds = array<i64: 32, 96>}, {pipeline_mode = #tpu.pipeline_mode<synchronous>, transform_indices = @transform_2, window_bounds = array<i64: 1, 96>}, {pipeline_mode = #tpu.pipeline_mode<synchronous>, transform_indices = @transform_3, window_bounds = array<i64: 96, 384>}, {pipeline_mode = #tpu.pipeline_mode<synchronous>, transform_indices = @transform_4, window_bounds = array<i64: 1, 384>}, {transform_indices = @transform_5, window_bounds = array<i64: 8, 384>}]} {
    %c0 = arith.constant 0 : index
    %c0_0 = arith.constant 0 : index
    %0 = vector.load %arg1[%c0, %c0_0] : memref<8x32xbf16, #tpu.memory_space<vmem>>, vector<8x32xbf16>
    %c0_1 = arith.constant 0 : index
    %c0_2 = arith.constant 0 : index
    %1 = vector.load %arg2[%c0_1, %c0_2] : memref<32x96xbf16, #tpu.memory_space<vmem>>, vector<32x96xbf16>
    %cst = arith.constant dense<0.000000e+00> : vector<8x96xf32>
    %2 = tpu.matmul %0, %1, %cst {dimension_numbers = #tpu.dot_dimension_numbers<[1], [0], [0], [1], [0, 0, 1, 1], [], []>} : vector<8x32xbf16>, vector<32x96xbf16>, vector<8x96xf32> -> vector<8x96xf32>
    %c0_3 = arith.constant 0 : index
    %c0_4 = arith.constant 0 : index
    %3 = vector.load %arg3[%c0_3, %c0_4] : memref<1x96xf32, #tpu.memory_space<vmem>>, vector<1x96xf32>
    %4 = vector.broadcast %3 : vector<1x96xf32> to vector<8x96xf32>
    %5 = arith.addf %2, %4 : vector<8x96xf32>
    %cst_5 = arith.constant 0.000000e+00 : f32
    %6 = vector.broadcast %cst_5 : f32 to vector<8x96xf32>
    %7 = arith.maximumf %5, %6 : vector<8x96xf32>
    %8 = arith.truncf %7 : vector<8x96xf32> to vector<8x96xbf16>
    %c0_6 = arith.constant 0 : index
    %c0_7 = arith.constant 0 : index
    %9 = vector.load %arg4[%c0_6, %c0_7] : memref<96x384xbf16, #tpu.memory_space<vmem>>, vector<96x384xbf16>
    %cst_8 = arith.constant dense<0.000000e+00> : vector<8x384xf32>
    %10 = tpu.matmul %8, %9, %cst_8 {dimension_numbers = #tpu.dot_dimension_numbers<[1], [0], [0], [1], [0, 0, 1, 1], [], []>} : vector<8x96xbf16>, vector<96x384xbf16>, vector<8x384xf32> -> vector<8x384xf32>
    %c0_9 = arith.constant 0 : index
    %c0_10 = arith.constant 0 : index
    %11 = vector.load %arg5[%c0_9, %c0_10] : memref<1x384xf32, #tpu.memory_space<vmem>>, vector<1x384xf32>
    %12 = vector.broadcast %11 : vector<1x384xf32> to vector<8x384xf32>
    %13 = arith.addf %10, %12 : vector<8x384xf32>
    %c0_11 = arith.constant 0 : index
    %c0_12 = arith.constant 0 : index
    %14 = vector.load %arg6[%c0_11, %c0_12] : memref<8x384xf32, #tpu.memory_space<vmem>>, vector<8x384xf32>
    tpu.vector_store %arg6[%c0_11, %c0_12], %13 {strides = array<i32>} : memref<8x384xf32, #tpu.memory_space<vmem>>, vector<8x384xf32>,
    return
  }
  func.func @transform_0(%arg0: i32) -> (i32, i32) {
    %c0_i32 = arith.constant 0 : i32
    %c0_i32_0 = arith.constant 0 : i32
    return %arg0, %c0_i32 : i32, i32
  }
  func.func @transform_1(%arg0: i32) -> (i32, i32) {
    %c0_i32 = arith.constant 0 : i32
    %c0_i32_0 = arith.constant 0 : i32
    %c0_i32_1 = arith.constant 0 : i32
    return %c0_i32, %c0_i32_0 : i32, i32
  }
  func.func @transform_2(%arg0: i32) -> (i32, i32) {
    %c0_i32 = arith.constant 0 : i32
    %c0_i32_0 = arith.constant 0 : i32
    %c0_i32_1 = arith.constant 0 : i32
    return %c0_i32, %c0_i32_0 : i32, i32
  }
  func.func @transform_3(%arg0: i32) -> (i32, i32) {
    %c0_i32 = arith.constant 0 : i32
    %c0_i32_0 = arith.constant 0 : i32
    %c0_i32_1 = arith.constant 0 : i32
    return %c0_i32, %c0_i32_0 : i32, i32
  }
  func.func @transform_4(%arg0: i32) -> (i32, i32) {
    %c0_i32 = arith.constant 0 : i32
    %c0_i32_0 = arith.constant 0 : i32
    %c0_i32_1 = arith.constant 0 : i32
    return %c0_i32, %c0_i32_0 : i32, i32
  }
  func.func @transform_5(%arg0: i32) -> (i32, i32) {
    %c0_i32 = arith.constant 0 : i32
    %c0_i32_0 = arith.constant 0 : i32
    return %arg0, %c0_i32 : i32, i32
  }
}

</mosaic_0001>

<llo_original>
// kernel: tpu_custom_call.1
$region0: #{tpu_custom_call.1}
  #allocation0 [shape = 'u32[]', space=smem, size = 0x4, offset = 0x4, fixed_abs, tag = 'smem constant byte address 0x4 - core index']
  #allocation1 [shape = 'u32[144,128]{1,0:T(1,128)}', space=vmem, size = 0x12000, scoped, tag = 'internal scratch']
  %s0 = inlined_call_operand.hbm [shape: bf16[8,32], index: 0, kind: input, shape index: {}]
  %s1 = inlined_call_operand.hbm [shape: bf16[32,96], index: 1, kind: input, shape index: {}]
  %s2 = inlined_call_operand.vmem [shape: f32[1,96], index: 2, kind: input, shape index: {}]
  %s3 = inlined_call_operand.hbm [shape: bf16[96,384], index: 3, kind: input, shape index: {}]
  %s4 = inlined_call_operand.vmem [shape: f32[1,384], index: 4, kind: input, shape index: {}]
  %s5 = inlined_call_operand.hbm [shape: f32[8,384], index: 5, kind: output, shape index: {}]
  %s6 = sld [smem:[#allocation0]]
  $region42: #{tpu_custom_call.1} parent=0
    _
  %s8 = ssub.s32 1, %s6
  %s9 = scalar_select 0, %s8, %s6
  $region1: #{tpu_custom_call.1} parent=0
    #allocation2 [shape = 'u8[2048]{0}', space=vmem, size = 0x800, scoped, tag = 'input window, operand 0, single buffered']
    #allocation3 [shape = 's32[1]{0}', space=sflag, size = 0x4, scoped, tag = 'scoped memory for tpu_custom_call.1']
    #allocation4 [shape = 's32[1]{0}', space=sflag, size = 0x4, scoped, tag = 'scoped memory for tpu_custom_call.1']
    #allocation5 [shape = 'u8[8192]{0}', space=vmem, size = 0x2000, scoped, tag = 'input window, operand 1, single buffered']
    #allocation6 [shape = 's32[1]{0}', space=sflag, size = 0x4, scoped, tag = 'scoped memory for tpu_custom_call.1']
    #allocation7 [shape = 'u8[73728]{0}', space=vmem, size = 0x12000, scoped, tag = 'input window, operand 3, single buffered']
    #allocation8 [shape = 'u8[12288]{0}', space=vmem, size = 0x3000, scoped, tag = 'output window, operand 0, single buffered']
    %10 = vsyncpa [#allocation3], 0
    %11 = vsyncpa [#allocation6], 0
    %12 = vsyncpa [#allocation4], 0
    // Predicated region
    $region2: #{tpu_custom_call.1} parent=1 // pred_check
      _
    $region3: #{tpu_custom_call.1} parent=1 // pred_check_branch
      %14 = sbr.rel (0) target = $region5
    $region4: #{tpu_custom_call.1} parent=1 // pred_region
      %s16 = ssub.s32 64, 64
      %17 = vsyncadd [#allocation3], %s16
      %s19 = sshll.u32 [#allocation2], 4
      %s20 = int_to_ptr.vmem [resolvable:$true] %s19
      %22 = dma.hbm_to_vmem [thread:$0]  %s0, 64, %s20, [#allocation3]
    $region5: #{tpu_custom_call.1} parent=1 // pred_fallthru
      _
    // Predicated region
    $region6: #{tpu_custom_call.1} parent=1 // pred_check
      _
    $region7: #{tpu_custom_call.1} parent=1 // pred_check_branch
      %24 = sbr.rel (0) target = $region9
    $region8: #{tpu_custom_call.1} parent=1 // pred_region
      %s26 = ssub.s32 256, 256
      %27 = vsyncadd [#allocation6], %s26
      %s28 = sshll.u32 [#allocation5], 4
      %s29 = int_to_ptr.vmem [resolvable:$true] %s28
      %34 = dma.hbm_to_vmem [thread:$0]  %s1, 256, %s29, [#allocation6], 64, 64, 4
    $region9: #{tpu_custom_call.1} parent=1 // pred_fallthru
      _
    // Predicated region
    $region10: #{tpu_custom_call.1} parent=1 // pred_check
      _
    $region11: #{tpu_custom_call.1} parent=1 // pred_check_branch
      %36 = sbr.rel (0) target = $region13
    $region12: #{tpu_custom_call.1} parent=1 // pred_region
      _
    $region13: #{tpu_custom_call.1} parent=1 // pred_fallthru
      _
    // Predicated region
    $region14: #{tpu_custom_call.1} parent=1 // pred_check
      _
    $region15: #{tpu_custom_call.1} parent=1 // pred_check_branch
      %38 = sbr.rel (0) target = $region17
    $region16: #{tpu_custom_call.1} parent=1 // pred_region
      %s40 = ssub.s32 2304, 2304
      %41 = vsyncadd [#allocation6], %s40
      %s42 = sshll.u32 [#allocation7], 4
      %s43 = int_to_ptr.vmem [resolvable:$true] %s42
      %48 = dma.hbm_to_vmem [thread:$0]  %s3, 2304, %s43, [#allocation6], 192, 192, 12
    $region17: #{tpu_custom_call.1} parent=1 // pred_fallthru
      _
    // Predicated region
    $region18: #{tpu_custom_call.1} parent=1 // pred_check
      _
    $region19: #{tpu_custom_call.1} parent=1 // pred_check_branch
      %50 = sbr.rel (0) target = $region21
    $region20: #{tpu_custom_call.1} parent=1 // pred_region
      _
    $region21: #{tpu_custom_call.1} parent=1 // pred_fallthru
      _
    // Predicated region
    $region22: #{tpu_custom_call.1} parent=1 // pred_check
      _
    $region23: #{tpu_custom_call.1} parent=1 // pred_check_branch
      %52 = sbr.rel (0) target = $region25
    $region24: #{tpu_custom_call.1} parent=1 // pred_region
      %53 = dma.done [#allocation3], 64
    $region25: #{tpu_custom_call.1} parent=1 // pred_fallthru
      _
    // Predicated region
    $region26: #{tpu_custom_call.1} parent=1 // pred_check
      _
    $region27: #{tpu_custom_call.1} parent=1 // pred_check_branch
      %55 = sbr.rel (0) target = $region29
    $region28: #{tpu_custom_call.1} parent=1 // pred_region
      %56 = dma.done [#allocation6], 256
    $region29: #{tpu_custom_call.1} parent=1 // pred_fallthru
      _
    // Predicated region
    $region30: #{tpu_custom_call.1} parent=1 // pred_check
      _
    $region31: #{tpu_custom_call.1} parent=1 // pred_check_branch
      %58 = sbr.rel (0) target = $region33
    $region32: #{tpu_custom_call.1} parent=1 // pred_region
      %59 = dma.done [#allocation6], 2304
    $region33: #{tpu_custom_call.1} parent=1 // pred_fallthru
      _
    %v61 = vld [vmem:[#allocation2] sm:$0xf]
    %v62 = vld [vmem:[#allocation5] sm:$0xf]
    %v63 = vld [vmem:[#allocation5 + $0x4] sm:$0xf]
    %v64 = vld [vmem:[#allocation5 + $0x8] sm:$0xf]
    %v65 = vld [vmem:[#allocation5 + $0xc] sm:$0xf]
    %v66 = vld [vmem:[%s2] sm:$0x1]
    %v68 = vlaneseq
    %v69 = vshrl.u32 %v68, 7
    %v70 = vsub.s32 0, %v69
    %v71 = vrot.slane %v66, %v70
    %v77 = vunpack.c.l.b16 %v62
    %v78 = vunpack.c.l.b16 %v63
    %v79 = vunpack.c.l.b16 %v64
    %v80 = vunpack.c.l.b16 %v65
    %v81 = vpack.c.b16 %v78, %v77
    %v82 = vpack.c.b16 %v80, %v79
    %vm85 = vcmask 261120
    %v87 = vsel %vm85, %v61, 0
    %89 = vmatprep.subr.bf16.mxu0 0
    %90 = vmatpush1.bf16.msra.mxu0 %v81
    %91 = vmatprep.subr.bf16.mxu0 0
    %92 = vmatpush1.bf16.msra.mxu0 %v82
    %93 = vmatprep.subr.bf16.mxu0 0
    %94 = vmatpush1.bf16.msra.mxu0 0
    %95 = vmatprep.subr.bf16.mxu0 0
    %96 = vmatpush1.bf16.msra.mxu0 0
    %97 = vmatprep.subr.bf16.mxu0 0
    %98 = vmatpush1.bf16.msra.mxu0 0
    %99 = vmatprep.subr.bf16.mxu0 0
    %100 = vmatpush1.bf16.msra.mxu0 0
    %101 = vmatprep.subr.bf16.mxu0 0
    %102 = vmatpush1.bf16.msra.mxu0 0
    %103 = vmatprep.subr.bf16.mxu0 0
    %104 = vmatpush1.bf16.msra.mxu0 0
    %105 = vmatprep.subr.bf16.mxu0 0
    %106 = vmatpush1.bf16.msra.mxu0 0
    %107 = vmatprep.subr.bf16.mxu0 0
    %108 = vmatpush1.bf16.msra.mxu0 0
    %109 = vmatprep.subr.bf16.mxu0 0
    %110 = vmatpush1.bf16.msra.mxu0 0
    %111 = vmatprep.subr.bf16.mxu0 0
    %112 = vmatpush1.bf16.msra.mxu0 0
    %113 = vmatprep.subr.bf16.mxu0 0
    %114 = vmatpush1.bf16.msra.mxu0 0
    %115 = vmatprep.subr.bf16.mxu0 0
    %116 = vmatpush1.bf16.msra.mxu0 0
    %117 = vmatprep.subr.bf16.mxu0 0
    %118 = vmatpush1.bf16.msra.mxu0 0
    %119 = vmatprep.subr.bf16.mxu0 0
    %120 = vmatpush1.bf16.msra.mxu0 0
    %121 = vmatprep.mubr.bf16.mxu0 0
    %122 = vmatmul.mubr.bf16.gmra.mrb[0].mxu0 %v87
    %v123 = vpop.f32.mrb[0].mxu0
    %v124 = vadd.f32 %v71, %v123
    %v125 = vpop.f32.mrb[0].mxu0
    %v126 = vpop.f32.mrb[0].mxu0
    %v127 = vpop.f32.mrb[0].mxu0
    %128 = vdwg.mxu0
    %v129 = vmax.f32 %v124, 0.0
    %v130 = vpack.c.bf16 %v129, %v129
    %v131 = vld [vmem:[#allocation7] sm:$0xff]
    %v132 = vld [vmem:[#allocation7 + $0x8] sm:$0xf]
    %v133 = vld [vmem:[#allocation7 + $0xc] sm:$0xff]
    %v134 = vld [vmem:[#allocation7 + $0x14] sm:$0xf]
    %v135 = vld [vmem:[#allocation7 + $0x18] sm:$0xff]
    %v136 = vld [vmem:[#allocation7 + $0x20] sm:$0xf]
    %v137 = vld [vmem:[#allocation7 + $0x24] sm:$0xff]
    %v138 = vld [vmem:[#allocation7 + $0x2c] sm:$0xf]
    %v139 = vld [vmem:[#allocation7 + $0x30] sm:$0xff]
    %v140 = vld [vmem:[#allocation7 + $0x38] sm:$0xf]
    %v141 = vld [vmem:[#allocation7 + $0x3c] sm:$0xff]
    %v142 = vld [vmem:[#allocation7 + $0x44] sm:$0xf]
    %v143 = vld [vmem:[#allocation7 + $0x48] sm:$0xff]
    %v144 = vld [vmem:[#allocation7 + $0x50] sm:$0xf]
    %v145 = vld [vmem:[#allocation7 + $0x54] sm:$0xff]
    %v146 = vld [vmem:[#allocation7 + $0x5c] sm:$0xf]
    %v147 = vld [vmem:[#allocation7 + $0x60] sm:$0xff]
    %v148 = vld [vmem:[#allocation7 + $0x68] sm:$0xf]
    %v149 = vld [vmem:[#allocation7 + $0x6c] sm:$0xff]
    %v150 = vld [vmem:[#allocation7 + $0x74] sm:$0xf]
    %v151 = vld [vmem:[#allocation7 + $0x78] sm:$0xff]
    %v152 = vld [vmem:[#allocation7 + $0x80] sm:$0xf]
    %v153 = vld [vmem:[#allocation7 + $0x84] sm:$0xff]
    %v154 = vld [vmem:[#allocation7 + $0x8c] sm:$0xf]
    %v155 = vld [vmem:[%s4] sm:$0x7]
    %v157 = vlaneseq
    %v158 = vshrl.u32 %v157, 7
    %v159 = vsub.s32 0, %v158
    %v160 = vrot.slane %v155, %v159
    %v161 = vlaneseq
    %v162 = vshrl.u32 %v161, 7
    %v163 = vsub.s32 1, %v162
    %v164 = vrot.slane %v155, %v163
    %v165 = vlaneseq
    %v166 = vshrl.u32 %v165, 7
    %v167 = vsub.s32 2, %v166
    %v168 = vrot.slane %v155, %v167
    %v196 = vunpack.c.l.b16 %v131
    %v197 = vunpack.c.h.b16 %v131
    %v198 = vunpack.c.l.b16 %v132
    %v199 = vunpack.c.l.b16 %v133
    %v200 = vunpack.c.h.b16 %v133
    %v201 = vunpack.c.l.b16 %v134
    %v202 = vunpack.c.l.b16 %v135
    %v203 = vunpack.c.h.b16 %v135
    %v204 = vunpack.c.l.b16 %v136
    %v205 = vunpack.c.l.b16 %v137
    %v206 = vunpack.c.h.b16 %v137
    %v207 = vunpack.c.l.b16 %v138
    %v208 = vunpack.c.l.b16 %v139
    %v209 = vunpack.c.h.b16 %v139
    %v210 = vunpack.c.l.b16 %v140
    %v211 = vunpack.c.l.b16 %v141
    %v212 = vunpack.c.h.b16 %v141
    %v213 = vunpack.c.l.b16 %v142
    %v214 = vunpack.c.l.b16 %v143
    %v215 = vunpack.c.h.b16 %v143
    %v216 = vunpack.c.l.b16 %v144
    %v217 = vunpack.c.l.b16 %v145
    %v218 = vunpack.c.h.b16 %v145
    %v219 = vunpack.c.l.b16 %v146
    %v220 = vunpack.c.l.b16 %v147
    %v221 = vunpack.c.h.b16 %v147
    %v222 = vunpack.c.l.b16 %v148
    %v223 = vunpack.c.l.b16 %v149
    %v224 = vunpack.c.h.b16 %v149
    %v225 = vunpack.c.l.b16 %v150
    %v226 = vunpack.c.l.b16 %v151
    %v227 = vunpack.c.h.b16 %v151
    %v228 = vunpack.c.l.b16 %v152
    %v229 = vunpack.c.l.b16 %v153
    %v230 = vunpack.c.h.b16 %v153
    %v231 = vunpack.c.l.b16 %v154
    %v232 = vpack.c.b16 %v199, %v196
    %v233 = vpack.c.b16 %v200, %v197
    %v234 = vpack.c.b16 %v201, %v198
    %v235 = vpack.c.b16 %v205, %v202
    %v236 = vpack.c.b16 %v206, %v203
    %v237 = vpack.c.b16 %v207, %v204
    %v238 = vpack.c.b16 %v211, %v208
    %v239 = vpack.c.b16 %v212, %v209
    %v240 = vpack.c.b16 %v213, %v210
    %v241 = vpack.c.b16 %v217, %v214
    %v242 = vpack.c.b16 %v218, %v215
    %v243 = vpack.c.b16 %v219, %v216
    %v244 = vpack.c.b16 %v223, %v220
    %v245 = vpack.c.b16 %v224, %v221
    %v246 = vpack.c.b16 %v225, %v222
    %v247 = vpack.c.b16 %v229, %v226
    %v248 = vpack.c.b16 %v230, %v227
    %v249 = vpack.c.b16 %v231, %v228
    %vm268 = vcmask 785408
    %v270 = vsel %vm268, %v130, 0
    %272 = vmatprep.subr.bf16.mxu0 %v233
    %273 = vmatpush1.bf16.msra.mxu0 %v232
    %274 = vmatprep.subr.bf16.mxu0 %v236
    %275 = vmatpush1.bf16.msra.mxu0 %v235
    %276 = vmatprep.subr.bf16.mxu0 %v239
    %277 = vmatpush1.bf16.msra.mxu0 %v238
    %278 = vmatprep.subr.bf16.mxu0 %v242
    %279 = vmatpush1.bf16.msra.mxu0 %v241
    %280 = vmatprep.subr.bf16.mxu0 %v245
    %281 = vmatpush1.bf16.msra.mxu0 %v244
    %282 = vmatprep.subr.bf16.mxu0 %v248
    %283 = vmatpush1.bf16.msra.mxu0 %v247
    %284 = vmatprep.subr.bf16.mxu0 0
    %285 = vmatpush1.bf16.msra.mxu0 0
    %286 = vmatprep.subr.bf16.mxu0 0
    %287 = vmatpush1.bf16.msra.mxu0 0
    %288 = vmatprep.subr.bf16.mxu0 0
    %289 = vmatpush1.bf16.msra.mxu0 0
    %290 = vmatprep.subr.bf16.mxu0 0
    %291 = vmatpush1.bf16.msra.mxu0 0
    %292 = vmatprep.subr.bf16.mxu0 0
    %293 = vmatpush1.bf16.msra.mxu0 0
    %294 = vmatprep.subr.bf16.mxu0 0
    %295 = vmatpush1.bf16.msra.mxu0 0
    %296 = vmatprep.subr.bf16.mxu0 0
    %297 = vmatpush1.bf16.msra.mxu0 0
    %298 = vmatprep.subr.bf16.mxu0 0
    %299 = vmatpush1.bf16.msra.mxu0 0
    %300 = vmatprep.subr.bf16.mxu0 0
    %301 = vmatpush1.bf16.msra.mxu0 0
    %302 = vmatprep.subr.bf16.mxu0 0
    %303 = vmatpush1.bf16.msra.mxu0 0
    %304 = vmatprep.mubr.bf16.mxu0 0
    %305 = vmatmul.mubr.bf16.gmra.mrb[0].mxu0 %v270
    %v306 = vpop.f32.mrb[0].mxu0
    %v307 = vadd.f32 %v160, %v306
    %v308 = vpop.f32.mrb[0].mxu0
    %v309 = vadd.f32 %v164, %v308
    %v310 = vpop.f32.mrb[0].mxu0
    %v311 = vpop.f32.mrb[0].mxu0
    %312 = vdwg.mxu0
    %313 = vmatprep.subr.bf16.mxu0 0
    %314 = vmatpush1.bf16.msra.mxu0 %v234
    %315 = vmatprep.subr.bf16.mxu0 0
    %316 = vmatpush1.bf16.msra.mxu0 %v237
    %317 = vmatprep.subr.bf16.mxu0 0
    %318 = vmatpush1.bf16.msra.mxu0 %v240
    %319 = vmatprep.subr.bf16.mxu0 0
    %320 = vmatpush1.bf16.msra.mxu0 %v243
    %321 = vmatprep.subr.bf16.mxu0 0
    %322 = vmatpush1.bf16.msra.mxu0 %v246
    %323 = vmatprep.subr.bf16.mxu0 0
    %324 = vmatpush1.bf16.msra.mxu0 %v249
    %325 = vmatprep.subr.bf16.mxu0 0
    %326 = vmatpush1.bf16.msra.mxu0 0
    %327 = vmatprep.subr.bf16.mxu0 0
    %328 = vmatpush1.bf16.msra.mxu0 0
    %329 = vmatprep.subr.bf16.mxu0 0
    %330 = vmatpush1.bf16.msra.mxu0 0
    %331 = vmatprep.subr.bf16.mxu0 0
    %332 = vmatpush1.bf16.msra.mxu0 0
    %333 = vmatprep.subr.bf16.mxu0 0
    %334 = vmatpush1.bf16.msra.mxu0 0
    %335 = vmatprep.subr.bf16.mxu0 0
    %336 = vmatpush1.bf16.msra.mxu0 0
    %337 = vmatprep.subr.bf16.mxu0 0
    %338 = vmatpush1.bf16.msra.mxu0 0
    %339 = vmatprep.subr.bf16.mxu0 0
    %340 = vmatpush1.bf16.msra.mxu0 0
    %341 = vmatprep.subr.bf16.mxu0 0
    %342 = vmatpush1.bf16.msra.mxu0 0
    %343 = vmatprep.subr.bf16.mxu0 0
    %344 = vmatpush1.bf16.msra.mxu0 0
    %345 = vmatprep.mubr.bf16.mxu0 0
    %346 = vmatmul.mubr.bf16.gmra.mrb[0].mxu0 %v270
    %v347 = vpop.f32.mrb[0].mxu0
    %v348 = vadd.f32 %v168, %v347
    %v349 = vpop.f32.mrb[0].mxu0
    %v350 = vpop.f32.mrb[0].mxu0
    %v351 = vpop.f32.mrb[0].mxu0
    %352 = vdwg.mxu0
    %353 = vst [vmem:[#allocation8] sm:$0xff] %v307
    %354 = vst [vmem:[#allocation8 + $0x8] sm:$0xff] %v309
    %355 = vst [vmem:[#allocation8 + $0x10] sm:$0xff] %v348
    // Predicated region
    $region34: #{tpu_custom_call.1} parent=1 // pred_check
      _
    $region35: #{tpu_custom_call.1} parent=1 // pred_check_branch
      %357 = sbr.rel (0) target = $region37
    $region36: #{tpu_custom_call.1} parent=1 // pred_region
      %s359 = ssub.s32 384, 384
      %360 = vsyncadd [#allocation4], %s359
      %s362 = sshll.u32 [#allocation8], 4
      %s363 = int_to_ptr.vmem [resolvable:$true] %s362
      %365 = dma.vmem_to_hbm [thread:$0]  %s363, 384, %s5, [#allocation4]
    $region37: #{tpu_custom_call.1} parent=1 // pred_fallthru
      _
    // Predicated region
    $region38: #{tpu_custom_call.1} parent=1 // pred_check
      _
    $region39: #{tpu_custom_call.1} parent=1 // pred_check_branch
      %367 = sbr.rel (0) target = $region41
    $region40: #{tpu_custom_call.1} parent=1 // pred_region
      %368 = dma.done [#allocation4], 384
    $region41: #{tpu_custom_call.1} parent=1 // pred_fallthru
      _
    %369 = vsyncpa [#allocation3], 1
    %370 = vsyncpa [#allocation6], 1
    %371 = vsyncpa [#allocation4], 1

</llo_original>
